<compile_context>
chip_gen: v5e
topology: v5e:2x2
jax: 0.10.0
libtpu: 0.0.40
codegen_flags: <defaults>
</compile_context>

<pallas_src>
import functools

import jax
import jax.numpy as jnp
from jax import lax
from jax.experimental import pallas as pl
from jax.experimental.pallas import tpu as pltpu


def _round_up(x: int, m: int) -> int:
    return ((x + m - 1) // m) * m


def _focal_loss_kernel(logits_ref, target_ref, out_ref, *,
                       gamma: float, n_valid: int, tile_n: int):
    # logits_ref: (TILE_N, C) native-dtype tile in VMEM (last dim = full C)
    # target_ref: (TILE_N, 1)  int32 tile in VMEM
    # out_ref   : (TILE_N, 1)  f32 per-row loss contribution (padding rows -> 0)
    x = logits_ref[...].astype(jnp.float32)                         # (TILE_N, C)

    # --- numerically stable softmax pieces over the class dim ---
    m = jnp.max(x, axis=-1, keepdims=True)                          # (TILE_N, 1)
    xs = x - m                                                      # x dead after this
    e = jnp.exp(xs)                                                 # (TILE_N, C)
    sum_e = jnp.sum(e, axis=-1, keepdims=True)                      # (TILE_N, 1)

    # --- gather the shifted logit at the target class via one-hot select ---
    t = target_ref[...]                                             # (TILE_N, 1)
    col = lax.broadcasted_iota(jnp.int32, xs.shape, 1)              # (TILE_N, C)
    xs_t = jnp.sum(jnp.where(col == t, xs, 0.0), axis=-1, keepdims=True)

    # --- focal modulation only at the target class (per-row scalars) ---
    log_p_t = xs_t - jnp.log(sum_e)                                 # (TILE_N, 1)
    p_t = jnp.exp(log_p_t)
    one_minus_p = 1.0 - p_t
    if float(gamma) == 2.0:
        focal = one_minus_p * one_minus_p
    else:
        focal = jnp.power(one_minus_p, jnp.float32(gamma))
    picked = focal * log_p_t                                        # (TILE_N, 1)

    # --- mask rows past the true N (ragged last tile reads garbage rows) ---
    row = (lax.broadcasted_iota(jnp.int32, (tile_n, 1), 0)
           + pl.program_id(0) * tile_n)
    out_ref[...] = jnp.where(row < n_valid, picked, 0.0)


def _choose_tile_n(n_rows: int, n_classes: int, itemsize: int) -> int:
    # Lane footprint of one row of the tile inside vregs (padded to 128 lanes).
    c_lanes = _round_up(n_classes, 128)
    # Sublane granularity for the input dtype: f32 -> 8, bf16 -> 16, int8/fp8 -> 32.
    sublane = max(8, 32 // max(itemsize, 1))
    # Peak live VMEM per tile row:
    #   2x double-buffered native-dtype input tile
    # + ~3 live f32 (tile_n, C) temporaries (shifted logits, exp, one-hot select).
    bytes_per_row = 2 * c_lanes * itemsize + 3 * c_lanes * 4
    budget = 40 * 1024 * 1024          # conservative vs. v7x's 64 MiB VMEM
    tn = budget // bytes_per_row
    tn = max(sublane, min(1024, (tn // sublane) * sublane))
    tn = min(tn, _round_up(n_rows, sublane))
    return int(tn)


def focal_loss(logits: jax.Array, targets: jax.Array, gamma: float = 2.0) -> jax.Array:
    """Pallas FocalLoss forward.  logits: (N, C) float, targets: (N,) int."""
    N, C = logits.shape
    if not jnp.issubdtype(logits.dtype, jnp.floating):
        logits = logits.astype(jnp.float32)
    itemsize = jnp.dtype(logits.dtype).itemsize

    tile_n = _choose_tile_n(N, C, itemsize)
    num_tiles = pl.cdiv(N, tile_n)
    t2d = targets.astype(jnp.int32).reshape(N, 1)

    per_row = pl.pallas_call(
        functools.partial(_focal_loss_kernel, gamma=gamma, n_valid=N, tile_n=tile_n),
        out_shape=jax.ShapeDtypeStruct((N, 1), jnp.float32),
        grid=(num_tiles,),
        in_specs=[
            # Last block dim == full class dim C: no class padding needed, lane
            # masking inside the vregs is handled by the compiler.
            pl.BlockSpec((tile_n, C), lambda i: (i, 0)),
            pl.BlockSpec((tile_n, 1), lambda i: (i, 0)),
        ],
        out_specs=pl.BlockSpec((tile_n, 1), lambda i: (i, 0)),
        compiler_params=pltpu.CompilerParams(
            # Row tiles are independent -> megacore-shardable on v7x (2 TCs).
            dimension_semantics=("parallel",),
            vmem_limit_bytes=48 * 1024 * 1024,
        ),
        cost_estimate=pl.CostEstimate(
            flops=6 * N * C,
            transcendentals=N * C + 3 * N,
            bytes_accessed=N * C * itemsize + N * 4 + N * 4,
        ),
    )(logits, t2d)

    # weight=None, reduction='mean': divide by the true number of rows.
    return -jnp.sum(per_row) / jnp.float32(N)


def _focal_loss_ref(logits, targets, gamma=2.0):
    # Pure-JAX reference for correctness check.
    log_prob = jax.nn.log_softmax(logits.astype(jnp.float32), axis=-1)
    prob = jnp.exp(log_prob)
    mod = (1.0 - prob) ** gamma * log_prob
    picked = jnp.take_along_axis(mod, targets[:, None].astype(jnp.int32), axis=-1)[:, 0]
    return -jnp.mean(picked)


if __name__ == "__main__":
    key = jax.random.PRNGKey(0)
    k1, k2 = jax.random.split(key)

    N, C = 8, 32  # batch of 8 samples, 32 classes
    logits = jax.random.normal(k1, (N, C), dtype=jnp.float32)
    targets = jax.random.randint(k2, (N,), 0, C, dtype=jnp.int32)

    loss = focal_loss(logits, targets, gamma=2.0)
    jax.block_until_ready(loss)

    ref = _focal_loss_ref(logits, targets, gamma=2.0)
    assert jnp.allclose(loss, ref, atol=1e-5, rtol=1e-4), (loss, ref)

    print("KERNEL_OK")
</pallas_src>

<mosaic_0001>
module attributes {stable_mosaic.version = 11 : i64} {
  func.func @_focal_loss_kernel(%arg0: i32, %arg1: memref<8x32xf32, #tpu.memory_space<vmem>>, %arg2: memref<8x1xi32, #tpu.memory_space<vmem>>, %arg3: memref<8x1xf32, #tpu.memory_space<vmem>>) attributes {dimension_semantics = [#tpu.dimension_semantics<parallel>], iteration_bounds = array<i64: 1>, scalar_prefetch = 0 : i64, scratch_operands = 0 : i64, tpu.core_type = #tpu.core_type<tc>, window_params = [{transform_indices = @transform_0, window_bounds = array<i64: 8, 32>}, {transform_indices = @transform_1, window_bounds = array<i64: 8, 1>}, {transform_indices = @transform_2, window_bounds = array<i64: 8, 1>}]} {
    %c0 = arith.constant 0 : index
    %c0_0 = arith.constant 0 : index
    %0 = vector.load %arg1[%c0, %c0_0] : memref<8x32xf32, #tpu.memory_space<vmem>>, vector<8x32xf32>
    %cst = arith.constant dense<0xFF800000> : vector<8xf32>
    %1 = vector.multi_reduction <maximumf>, %0, %cst [1] : vector<8x32xf32> to vector<8xf32>
    %2 = vector.shape_cast %1 : vector<8xf32> to vector<8x1xf32>
    %3 = vector.broadcast %2 : vector<8x1xf32> to vector<8x32xf32>
    %4 = arith.subf %0, %3 : vector<8x32xf32>
    %5 = math.exp %4 : vector<8x32xf32>
    %cst_1 = arith.constant dense<0.000000e+00> : vector<8xf32>
    %6 = vector.multi_reduction <add>, %5, %cst_1 [1] : vector<8x32xf32> to vector<8xf32>
    %7 = vector.shape_cast %6 : vector<8xf32> to vector<8x1xf32>
    %c0_2 = arith.constant 0 : index
    %c0_3 = arith.constant 0 : index
    %8 = vector.load %arg2[%c0_2, %c0_3] : memref<8x1xi32, #tpu.memory_space<vmem>>, vector<8x1xi32>
    %9 = tpu.iota {dimensions = array<i32: 1>} : vector<8x32xi32>
    %10 = vector.broadcast %8 : vector<8x1xi32> to vector<8x32xi32>
    %11 = arith.cmpi eq, %9, %10 : vector<8x32xi32>
    %cst_4 = arith.constant 0.000000e+00 : f32
    %12 = vector.broadcast %cst_4 : f32 to vector<8x32xf32>
    %13 = arith.select %11, %4, %12 : vector<8x32xi1>, vector<8x32xf32>
    %cst_5 = arith.constant dense<0.000000e+00> : vector<8xf32>
    %14 = vector.multi_reduction <add>, %13, %cst_5 [1] : vector<8x32xf32> to vector<8xf32>
    %15 = vector.shape_cast %14 : vector<8xf32> to vector<8x1xf32>
    %16 = math.log %7 : vector<8x1xf32>
    %17 = arith.subf %15, %16 : vector<8x1xf32>
    %18 = math.exp %17 : vector<8x1xf32>
    %cst_6 = arith.constant 1.000000e+00 : f32
    %19 = vector.broadcast %cst_6 : f32 to vector<8x1xf32>
    %20 = arith.subf %19, %18 : vector<8x1xf32>
    %21 = arith.mulf %20, %20 : vector<8x1xf32>
    %22 = arith.mulf %21, %17 : vector<8x1xf32>
    %23 = tpu.iota {dimensions = array<i32: 0>} : vector<8x1xi32>
    %c8_i32 = arith.constant 8 : i32
    %24 = arith.muli %arg0, %c8_i32 : i32
    %25 = vector.broadcast %24 : i32 to vector<8x1xi32>
    %26 = arith.addi %23, %25 : vector<8x1xi32>
    %c8_i32_7 = arith.constant 8 : i32
    %27 = vector.broadcast %c8_i32_7 : i32 to vector<8x1xi32>
    %28 = arith.cmpi slt, %26, %27 : vector<8x1xi32>
    %cst_8 = arith.constant 0.000000e+00 : f32
    %29 = vector.broadcast %cst_8 : f32 to vector<8x1xf32>
    %30 = arith.select %28, %22, %29 : vector<8x1xi1>, vector<8x1xf32>
    %c0_9 = arith.constant 0 : index
    %c0_10 = arith.constant 0 : index
    %31 = vector.load %arg3[%c0_9, %c0_10] : memref<8x1xf32, #tpu.memory_space<vmem>>, vector<8x1xf32>
    tpu.vector_store %arg3[%c0_9, %c0_10], %30 {strides = array<i32>} : memref<8x1xf32, #tpu.memory_space<vmem>>, vector<8x1xf32>,
    return
  }
  func.func @transform_0(%arg0: i32) -> (i32, i32) {
    %c0_i32 = arith.constant 0 : i32
    %c0_i32_0 = arith.constant 0 : i32
    return %arg0, %c0_i32 : i32, i32
  }
  func.func @transform_1(%arg0: i32) -> (i32, i32) {
    %c0_i32 = arith.constant 0 : i32
    %c0_i32_0 = arith.constant 0 : i32
    return %arg0, %c0_i32 : i32, i32
  }
  func.func @transform_2(%arg0: i32) -> (i32, i32) {
    %c0_i32 = arith.constant 0 : i32
    %c0_i32_0 = arith.constant 0 : i32
    return %arg0, %c0_i32 : i32, i32
  }
}

</mosaic_0001>

<llo_original>
// kernel: tpu_custom_call.1
$region0: #{tpu_custom_call.1}
  #allocation0 [shape = 'u32[]', space=smem, size = 0x4, offset = 0x4, fixed_abs, tag = 'smem constant byte address 0x4 - core index']
  #allocation1 [shape = 'u32[72,128]{1,0:T(1,128)}', space=vmem, size = 0x9000, scoped, tag = 'internal scratch']
  %s0 = inlined_call_operand.vmem [shape: f32[8,32], index: 0, kind: input, shape index: {}]
  %s1 = inlined_call_operand.vmem [shape: s32[8,1], index: 1, kind: input, shape index: {}]
  %s2 = inlined_call_operand.vmem [shape: f32[8,1], index: 2, kind: output, shape index: {}]
  %s3 = sld [smem:[#allocation0]]
  $region18: #{tpu_custom_call.1} parent=0
    _
  %s5 = ssub.s32 1, %s3
  %s6 = scalar_select 0, %s5, %s3
  // Predicated region
  $region2: #{tpu_custom_call.1} parent=0 // pred_check
    _
  $region3: #{tpu_custom_call.1} parent=0 // pred_check_branch
    %8 = sbr.rel (0) target = $region5
  $region4: #{tpu_custom_call.1} parent=0 // pred_region
    _
  $region5: #{tpu_custom_call.1} parent=0 // pred_fallthru
    _
  // Predicated region
  $region6: #{tpu_custom_call.1} parent=0 // pred_check
    _
  $region7: #{tpu_custom_call.1} parent=0 // pred_check_branch
    %10 = sbr.rel (0) target = $region9
  $region8: #{tpu_custom_call.1} parent=0 // pred_region
    _
  $region9: #{tpu_custom_call.1} parent=0 // pred_fallthru
    _
  %v11 = vld [vmem:[%s0] sm:$0xff]
  %vm12 = vcmask 261120
  %v13 = vsel %vm12, %v11, -inf
  %14 = vmax.xlane.f32.xlu0 %v13
  %v15 = vpop.xlane.xlu0 %14
  %v16 = vsub.f32 %v11, %v15
  %v17 = vmul.f32 %v16, 1.442695
  %v18 = vpow.pop %v17
  %v19 = vsel %vm12, %v18, 0.0
  %20 = vadd.xlane.f32.xlu0 %v19
  %v21 = vpop.xlane.xlu0 %20
  %v22 = vld [vmem:[%s1] sm:$0xff]
  %v23 = vlaneseq
  %v24 = vand.u32 %v23, 127
  %25 = vset.pattern.permute.xlu0 0
  %26 = vperm.xlu0 %25, %v22
  %v27 = vpop.permute.xlu0 %26
  %vm28 = vcmp.eq.s32.totalorder %v24, %v27
  %v29 = vsel %vm28, %v16, 0.0
  %v30 = vsel %vm12, %v29, 0.0
  %31 = vadd.xlane.f32.xlu0 %v30
  %v32 = vpop.xlane.xlu0 %31
  %v33 = vlog2.pop %v21
  %v34 = vmul.f32 %v33, 0.6931472
  %v35 = vsub.f32 %v32, %v34
  %v36 = vmul.f32 %v35, 1.442695
  %v37 = vpow.pop %v36
  %v38 = vsub.f32 1.0, %v37
  %v39 = vmul.f32 %v38, %v38
  %v40 = vmul.f32 %v39, %v35
  %v41 = vlaneseq
  %v42 = vshrl.u32 %v41, 7
  %s43 = smul.u32 0, 8
  %v44 = vstv %s43
  %v45 = vadd.s32 %v42, %v44
  %vm46 = vcmp.lt.s32.totalorder %v45, 8
  %v47 = vsel %vm46, %v40, 0.0
  %vm48 = vcmask 7168
  %49 = vst.msk [vmem:[%s2] sm:$0xff] %vm48, %v47
  // Predicated region
  $region10: #{tpu_custom_call.1} parent=0 // pred_check
    _
  $region11: #{tpu_custom_call.1} parent=0 // pred_check_branch
    %51 = sbr.rel (0) target = $region13
  $region12: #{tpu_custom_call.1} parent=0 // pred_region
    _
  $region13: #{tpu_custom_call.1} parent=0 // pred_fallthru
    _
  // Predicated region
  $region14: #{tpu_custom_call.1} parent=0 // pred_check
    _
  $region15: #{tpu_custom_call.1} parent=0 // pred_check_branch
    %53 = sbr.rel (0) target = $region17
  $region16: #{tpu_custom_call.1} parent=0 // pred_region
    _
  $region17: #{tpu_custom_call.1} parent=0 // pred_fallthru
    _

</llo_original>
